<compile_context>
chip_gen: v6e
topology: v6e:2x2x1
jax: 0.10.0
libtpu: 0.0.40
codegen_flags: <defaults>
</compile_context>

<pallas_src>
import jax
import jax.numpy as jnp
import numpy as np
from jax.experimental import pallas as pl
from jax.experimental.pallas import tpu as pltpu

B = 2    # batch
S = 8    # sequence length
H = 32   # hidden_size


def pooler_kernel(x_ref, w_ref, b_ref, out_ref):
    """ReLU((B,H) @ (H,H) + (1,H)) in one MXU pass; all refs VMEM-resident."""
    y = jnp.dot(x_ref[...], w_ref[...], preferred_element_type=jnp.float32)
    out_ref[...] = jnp.maximum(y + b_ref[...], 0.0)


@jax.jit
def pooler(hidden_states, weight, bias):
    """Pooler forward.

    hidden_states: (B, S, H) f32
    weight:        (H, H) f32 in PyTorch nn.Linear layout (out_features, in_features)
    bias:          (1, H) f32
    returns:       (B, H) f32
    """
    # Slice in the wrapper so only the first token ever reaches the kernel
    # (activation DMA cut by S x; no in-kernel sublane pick).
    first_token = hidden_states[:, 0, :]              # (B, H)
    w_t = weight.T                                    # (in, out) for x @ W^T

    return pl.pallas_call(
        pooler_kernel,
        out_shape=jax.ShapeDtypeStruct((first_token.shape[0], weight.shape[0]),
                                       jnp.float32),
        # No grid: single invocation, whole arrays in VMEM, no pipeline
        # scaffolding and no double-buffering.
        in_specs=[
            pl.BlockSpec(memory_space=pltpu.MemorySpace.VMEM),  # first token (B, H)
            pl.BlockSpec(memory_space=pltpu.MemorySpace.VMEM),  # weight^T   (H, H)
            pl.BlockSpec(memory_space=pltpu.MemorySpace.VMEM),  # bias       (1, H)
        ],
        out_specs=pl.BlockSpec(memory_space=pltpu.MemorySpace.VMEM),
    )(first_token, w_t, bias)


def reference_jax(hidden_states, weight, bias):
    """Pure-JAX reference of the Pooler forward (PyTorch nn.Linear semantics)."""
    return jax.nn.relu(hidden_states[:, 0, :] @ weight.T + bias[0])


if __name__ == "__main__":
    key = jax.random.PRNGKey(0)
    k_x, k_w, k_b = jax.random.split(key, 3)

    hidden_states = jax.random.normal(k_x, (B, S, H), jnp.float32)
    # nn.Linear parameters in PyTorch layout: weight (out_features, in_features).
    weight = jax.random.normal(k_w, (H, H), jnp.float32) * 0.05
    bias = jax.random.normal(k_b, (1, H), jnp.float32) * 0.01

    out = jax.block_until_ready(pooler(hidden_states, weight, bias))

    ref = reference_jax(hidden_states, weight, bias)
    np.testing.assert_allclose(np.asarray(out), np.asarray(ref),
                               rtol=1e-5, atol=1e-5)
    print("KERNEL_OK")
</pallas_src>

<mosaic_0001>
module attributes {stable_mosaic.version = 11 : i64} {
  func.func @pooler_kernel(%arg0: memref<2x32xf32, #tpu.memory_space<vmem>>, %arg1: memref<32x32xf32, #tpu.memory_space<vmem>>, %arg2: memref<1x32xf32, #tpu.memory_space<vmem>>, %arg3: memref<2x32xf32, #tpu.memory_space<vmem>>) attributes {dimension_semantics = [], scalar_prefetch = 0 : i64, scratch_operands = 0 : i64, tpu.core_type = #tpu.core_type<tc>} {
    %c0 = arith.constant 0 : index
    %c0_0 = arith.constant 0 : index
    %0 = vector.load %arg0[%c0, %c0_0] : memref<2x32xf32, #tpu.memory_space<vmem>>, vector<2x32xf32>
    %c0_1 = arith.constant 0 : index
    %c0_2 = arith.constant 0 : index
    %1 = vector.load %arg1[%c0_1, %c0_2] : memref<32x32xf32, #tpu.memory_space<vmem>>, vector<32x32xf32>
    %cst = arith.constant dense<0.000000e+00> : vector<2x32xf32>
    %2 = tpu.matmul %0, %1, %cst {dimension_numbers = #tpu.dot_dimension_numbers<[1], [0], [0], [1], [0, 0, 1, 1], [], []>} : vector<2x32xf32>, vector<32x32xf32>, vector<2x32xf32> -> vector<2x32xf32>
    %c0_3 = arith.constant 0 : index
    %c0_4 = arith.constant 0 : index
    %3 = vector.load %arg2[%c0_3, %c0_4] : memref<1x32xf32, #tpu.memory_space<vmem>>, vector<1x32xf32>
    %4 = vector.broadcast %3 : vector<1x32xf32> to vector<2x32xf32>
    %5 = arith.addf %2, %4 : vector<2x32xf32>
    %cst_5 = arith.constant 0.000000e+00 : f32
    %6 = vector.broadcast %cst_5 : f32 to vector<2x32xf32>
    %7 = arith.maximumf %5, %6 : vector<2x32xf32>
    %c0_6 = arith.constant 0 : index
    %c0_7 = arith.constant 0 : index
    %8 = vector.load %arg3[%c0_6, %c0_7] : memref<2x32xf32, #tpu.memory_space<vmem>>, vector<2x32xf32>
    tpu.vector_store %arg3[%c0_6, %c0_7], %7 {strides = array<i32>} : memref<2x32xf32, #tpu.memory_space<vmem>>, vector<2x32xf32>,
    return
  }
}

</mosaic_0001>

<llo_original>
// kernel: pooler.1
$region0: #{pooler.1}
  #allocation0 [shape = 'u32[]', space=smem, size = 0x4, offset = 0x4, fixed_abs, tag = 'smem constant byte address 0x4 - core index']
  #allocation1 [shape = 'u32[144,128]{1,0:T(1,128)}', space=vmem, size = 0x12000, scoped, tag = 'internal scratch']
  %s0 = inlined_call_operand.vmem [shape: f32[2,32], index: 0, kind: input, shape index: {}]
  %s1 = inlined_call_operand.vmem [shape: f32[32,32], index: 1, kind: input, shape index: {}]
  %s2 = inlined_call_operand.vmem [shape: f32[1,32], index: 2, kind: input, shape index: {}]
  %s3 = inlined_call_operand.hbm [shape: f32[2,32], index: 3, kind: output, shape index: {}]
  %s4 = sld [smem:[#allocation0]]
  $region22: #{pooler.1} parent=0
    _
  %s6 = ssub.s32 1, %s4
  %s7 = scalar_select 0, %s6, %s4
  $region1: #{pooler.1} parent=0
    #allocation2 [shape = 'u8[1024]{0}', space=vmem, size = 0x400, scoped, tag = 'output window, operand 0, single buffered']
    #allocation3 [shape = 's32[1]{0}', space=sflag, size = 0x4, scoped, tag = 'scoped memory for pooler.1']
    %8 = vsyncpa [#allocation3], 0
    // Predicated region
    $region2: #{pooler.1} parent=1 // pred_check
      _
    $region3: #{pooler.1} parent=1 // pred_check_branch
      %10 = sbr.rel (0) target = $region5
    $region4: #{pooler.1} parent=1 // pred_region
      _
    $region5: #{pooler.1} parent=1 // pred_fallthru
      _
    // Predicated region
    $region6: #{pooler.1} parent=1 // pred_check
      _
    $region7: #{pooler.1} parent=1 // pred_check_branch
      %12 = sbr.rel (0) target = $region9
    $region8: #{pooler.1} parent=1 // pred_region
      _
    $region9: #{pooler.1} parent=1 // pred_fallthru
      _
    // Predicated region
    $region10: #{pooler.1} parent=1 // pred_check
      _
    $region11: #{pooler.1} parent=1 // pred_check_branch
      %14 = sbr.rel (0) target = $region13
    $region12: #{pooler.1} parent=1 // pred_region
      _
    $region13: #{pooler.1} parent=1 // pred_fallthru
      _
    %v15 = vld [vmem:[%s0] sm:$0x3]
    %v16 = vld [vmem:[%s1] sm:$0xff]
    %v17 = vld [vmem:[%s1 + $0x8] sm:$0xff]
    %v18 = vld [vmem:[%s1 + $0x10] sm:$0xff]
    %v19 = vld [vmem:[%s1 + $0x18] sm:$0xff]
    %v20 = vld [vmem:[%s2] sm:$0x1]
    %v22 = vlaneseq
    %v23 = vshrl.u32 %v22, 7
    %v24 = vsub.s32 0, %v23
    %v25 = vrot.slane %v20, %v24
    %vm27 = vcmask 261120
    %v29 = vsel %vm27, %v15, 0
    %31 = vmatprep.subr.mxu0 0.0
    %32 = vmatpush1.msra.mxu0 0.0
    %33 = vmatprep.subr.mxu0 0.0
    %34 = vmatpush1.msra.mxu0 0.0
    %35 = vmatprep.subr.mxu0 0.0
    %36 = vmatpush1.msra.mxu0 0.0
    %37 = vmatprep.subr.mxu0 0.0
    %38 = vmatpush1.msra.mxu0 0.0
    %39 = vmatprep.subr.mxu0 0.0
    %40 = vmatpush1.msra.mxu0 0.0
    %41 = vmatprep.subr.mxu0 0.0
    %42 = vmatpush1.msra.mxu0 0.0
    %43 = vmatprep.subr.mxu0 0.0
    %44 = vmatpush1.msra.mxu0 0.0
    %45 = vmatprep.subr.mxu0 0.0
    %46 = vmatpush1.msra.mxu0 0.0
    %47 = vmatprep.subr.mxu0 0.0
    %48 = vmatpush1.msra.mxu0 0.0
    %49 = vmatprep.subr.mxu0 0.0
    %50 = vmatpush1.msra.mxu0 0.0
    %51 = vmatprep.subr.mxu0 0.0
    %52 = vmatpush1.msra.mxu0 0.0
    %53 = vmatprep.subr.mxu0 0.0
    %54 = vmatpush1.msra.mxu0 0.0
    %55 = vmatprep.subr.mxu0 0.0
    %56 = vmatpush1.msra.mxu0 %v19
    %57 = vmatprep.subr.mxu0 0.0
    %58 = vmatpush1.msra.mxu0 %v18
    %59 = vmatprep.subr.mxu0 0.0
    %60 = vmatpush1.msra.mxu0 %v17
    %61 = vmatprep.subr.mxu0 0.0
    %62 = vmatpush1.msra.mxu0 %v16
    %63 = vmatprep.subr.mxu0 0.0
    %64 = vmatpush2.msra.mxu0 0.0
    %65 = vmatprep.subr.mxu0 0.0
    %66 = vmatpush2.msra.mxu0 0.0
    %67 = vmatprep.subr.mxu0 0.0
    %68 = vmatpush2.msra.mxu0 0.0
    %69 = vmatprep.subr.mxu0 0.0
    %70 = vmatpush2.msra.mxu0 0.0
    %71 = vmatprep.subr.mxu0 0.0
    %72 = vmatpush2.msra.mxu0 0.0
    %73 = vmatprep.subr.mxu0 0.0
    %74 = vmatpush2.msra.mxu0 0.0
    %75 = vmatprep.subr.mxu0 0.0
    %76 = vmatpush2.msra.mxu0 0.0
    %77 = vmatprep.subr.mxu0 0.0
    %78 = vmatpush2.msra.mxu0 0.0
    %79 = vmatprep.subr.mxu0 0.0
    %80 = vmatpush2.msra.mxu0 0.0
    %81 = vmatprep.subr.mxu0 0.0
    %82 = vmatpush2.msra.mxu0 0.0
    %83 = vmatprep.subr.mxu0 0.0
    %84 = vmatpush2.msra.mxu0 0.0
    %85 = vmatprep.subr.mxu0 0.0
    %86 = vmatpush2.msra.mxu0 0.0
    %87 = vmatprep.subr.mxu0 0.0
    %88 = vmatpush2.msra.mxu0 0.0
    %89 = vmatprep.subr.mxu0 0.0
    %90 = vmatpush2.msra.mxu0 0.0
    %91 = vmatprep.subr.mxu0 0.0
    %92 = vmatpush2.msra.mxu0 0.0
    %93 = vmatprep.subr.mxu0 0.0
    %94 = vmatpush2.msra.mxu0 0.0
    %95 = vmatprep.mubr.f32.mxu0 0.0
    %96 = vmatmul.mubr.f32.gmra.mxu0 %v29
    %v97 = vpop.f32.mrf.mxu0
    %v98 = vadd.f32 %v25, %v97
    %v99 = vpop.f32.mrf.mxu0
    %100 = vdwg.mxu0
    %v101 = vmax.f32 %v98, 0.0
    %vm102 = vcmask 254976
    %103 = vst.msk [vmem:[#allocation2] sm:$0x3] %vm102, %v101
    // Predicated region
    $region14: #{pooler.1} parent=1 // pred_check
      _
    $region15: #{pooler.1} parent=1 // pred_check_branch
      %105 = sbr.rel (0) target = $region17
    $region16: #{pooler.1} parent=1 // pred_region
      %s107 = ssub.s32 32, 32
      %108 = vsyncadd [#allocation3], %s107
      %s110 = sshll.u32 [#allocation2], 4
      %s111 = int_to_ptr.vmem [resolvable:$true] %s110
      %113 = dma.vmem_to_hbm [thread:$0]  %s111, 32, %s3, [#allocation3]
    $region17: #{pooler.1} parent=1 // pred_fallthru
      _
    // Predicated region
    $region18: #{pooler.1} parent=1 // pred_check
      _
    $region19: #{pooler.1} parent=1 // pred_check_branch
      %115 = sbr.rel (0) target = $region21
    $region20: #{pooler.1} parent=1 // pred_region
      %116 = dma.done [#allocation3], 32
    $region21: #{pooler.1} parent=1 // pred_fallthru
      _
    %117 = vsyncpa [#allocation3], 1

</llo_original>
